<compile_context>
chip_gen: v5e
topology: v5e:2x2
jax: 0.10.0
libtpu: 0.0.40
codegen_flags: <defaults>
</compile_context>

<pallas_src>
import numpy as np

import jax
import jax.numpy as jnp
from jax.experimental import pallas as pl
from jax.experimental.pallas import tpu as pltpu


# ---------------------------------------------------------------------------
# Primary path: zero-copy identity (output aliases the input HBM buffer).
# ---------------------------------------------------------------------------
def _identity_noop_kernel(x_ref, o_ref):
    # The output HBM buffer is aliased to the input HBM buffer, so the bytes
    # are already exactly where they need to be: nothing to load or store.
    del x_ref, o_ref


def _identity_alias_call(x: jax.Array) -> jax.Array:
    return pl.pallas_call(
        _identity_noop_kernel,
        out_shape=jax.ShapeDtypeStruct(x.shape, x.dtype),
        in_specs=[pl.BlockSpec(memory_space=pl.ANY)],   # stay in HBM, no auto-DMA
        out_specs=pl.BlockSpec(memory_space=pl.ANY),
        input_output_aliases={0: 0},                    # output IS the input buffer
    )(x)


def identity_forward(x: jax.Array) -> jax.Array:
    """Identity.forward(x) -> x with (ideally) zero HBM traffic."""
    try:
        return _identity_alias_call(x)
    except Exception:
        # Defensive fallback: if this JAX/Mosaic build rejects the aliased
        # no-op kernel, fall back to the tuned explicit copy below.
        return identity_copy(x)


# ---------------------------------------------------------------------------
# Secondary path: tuned explicit copy (when a distinct output buffer is needed).
# ---------------------------------------------------------------------------
def _copy_kernel(x_ref, o_ref):
    o_ref[...] = x_ref[...]


def identity_copy(x: jax.Array, *, tile_bytes: int = 4 * 1024 * 1024) -> jax.Array:
    """Identity as an explicit HBM->HBM copy into a fresh buffer.

    Lane-dense wide slab + multi-MiB tiles; no pad / no tail slice in the
    wrapper (reshape only).  2x HBM traffic is the floor for a real copy.
    """
    n = x.size
    if n == 0:
        return x

    orig_shape = x.shape
    itemsize = x.dtype.itemsize

    if n % 128 == 0:
        # Widest lane count (multiple of 128, <= 8192) that divides n exactly,
        # so the reshape is a pure metadata op (no jnp.pad, no tail slice) and
        # stores are unmasked full-width vst.
        units = n // 128
        width = 1
        for cand in range(min(64, units), 0, -1):
            if units % cand == 0:
                width = cand
                break
        lanes = 128 * width
    else:
        # Ragged total size: treat the flat array as one full-extent block
        # (full-array block dims are exempt from the (8,128) rule).
        # TODO(synk): for huge arrays whose size is not a multiple of 128, add
        # a masked-tail tiled path instead of a single block.
        lanes = n
    rows = n // lanes
    slab = x.reshape(rows, lanes)

    # Multi-MiB tiles amortize the ~0.35us per-grid-step overhead.  With
    # double-buffered input + output (4 x tile) a 4 MiB tile uses 16 MiB of
    # VMEM, safe on v5e/v6e/v7x; vmem_limit_bytes=48 MiB leaves headroom and
    # stays under v7x's 64 MiB physical VMEM.
    row_bytes = lanes * itemsize
    tile_rows = max(1, tile_bytes // row_bytes)
    if tile_rows >= 8:
        tile_rows = (tile_rows // 8) * 8          # keep sublane-aligned
    tile_rows = min(tile_rows, rows)
    grid = (pl.cdiv(rows, tile_rows),)            # never shrink the tile

    out = pl.pallas_call(
        _copy_kernel,
        out_shape=jax.ShapeDtypeStruct((rows, lanes), slab.dtype),
        grid_spec=pltpu.PrefetchScalarGridSpec(
            num_scalar_prefetch=0,
            grid=grid,
            in_specs=[pl.BlockSpec((tile_rows, lanes), lambda i: (i, 0))],
            out_specs=pl.BlockSpec((tile_rows, lanes), lambda i: (i, 0)),
        ),
        compiler_params=pltpu.CompilerParams(
            dimension_semantics=("parallel",),        # shard across TCs on v7x
            vmem_limit_bytes=48 * 1024 * 1024,
        ),
    )(slab)

    return out.reshape(orig_shape)


if __name__ == "__main__":
    key = jax.random.PRNGKey(0)
    # Small NCHW image batch consistent with an ImageToFeatures-style input.
    x = jax.random.normal(key, (2, 4, 16, 16), dtype=jnp.float32)
    x_host = np.asarray(x)   # host snapshot for the correctness checks

    # Explicit-copy path (distinct output buffer), tuned per the perf review.
    z = identity_copy(x)
    jax.block_until_ready(z)
    assert z.shape == x.shape and z.dtype == x.dtype
    assert np.array_equal(np.asarray(z), x_host)

    # Preferred zero-copy path (output aliases the input buffer, no DMA).
    y = identity_forward(x)
    jax.block_until_ready(y)
    assert y.shape == x.shape and y.dtype == x.dtype
    assert np.array_equal(np.asarray(y), x_host)

    print("KERNEL_OK")
</pallas_src>

<mosaic_0001>
module attributes {stable_mosaic.version = 11 : i64} {
  func.func @_copy_kernel(%arg0: i32, %arg1: memref<1x2048xf32, #tpu.memory_space<vmem>>, %arg2: memref<1x2048xf32, #tpu.memory_space<vmem>>) attributes {dimension_semantics = [#tpu.dimension_semantics<parallel>], iteration_bounds = array<i64: 1>, scalar_prefetch = 0 : i64, scratch_operands = 0 : i64, tpu.core_type = #tpu.core_type<tc>, window_params = [{transform_indices = @transform_0, window_bounds = array<i64: 1, 2048>}, {transform_indices = @transform_1, window_bounds = array<i64: 1, 2048>}]} {
    %c0 = arith.constant 0 : index
    %c0_0 = arith.constant 0 : index
    %0 = vector.load %arg1[%c0, %c0_0] : memref<1x2048xf32, #tpu.memory_space<vmem>>, vector<1x2048xf32>
    %c0_1 = arith.constant 0 : index
    %c0_2 = arith.constant 0 : index
    %1 = vector.load %arg2[%c0_1, %c0_2] : memref<1x2048xf32, #tpu.memory_space<vmem>>, vector<1x2048xf32>
    tpu.vector_store %arg2[%c0_1, %c0_2], %0 {strides = array<i32>} : memref<1x2048xf32, #tpu.memory_space<vmem>>, vector<1x2048xf32>,
    return
  }
  func.func @transform_0(%arg0: i32) -> (i32, i32) {
    %c0_i32 = arith.constant 0 : i32
    %c0_i32_0 = arith.constant 0 : i32
    return %arg0, %c0_i32 : i32, i32
  }
  func.func @transform_1(%arg0: i32) -> (i32, i32) {
    %c0_i32 = arith.constant 0 : i32
    %c0_i32_0 = arith.constant 0 : i32
    return %arg0, %c0_i32 : i32, i32
  }
}

</mosaic_0001>

<llo_original>
// kernel: tpu_custom_call.1
$region0: #{tpu_custom_call.1}
  #allocation0 [shape = 'u32[]', space=smem, size = 0x4, offset = 0x4, fixed_abs, tag = 'smem constant byte address 0x4 - core index']
  #allocation1 [shape = 'u32[72,128]{1,0:T(1,128)}', space=vmem, size = 0x9000, scoped, tag = 'internal scratch']
  %s0 = inlined_call_operand.hbm [shape: f32[1,2048], index: 0, kind: input, shape index: {}]
  %s1 = inlined_call_operand.hbm [shape: f32[1,2048], index: 1, kind: output, shape index: {}]
  %s2 = sld [smem:[#allocation0]]
  $region18: #{tpu_custom_call.1} parent=0
    _
  %s4 = ssub.s32 1, %s2
  %s5 = scalar_select 0, %s4, %s2
  $region1: #{tpu_custom_call.1} parent=0
    #allocation2 [shape = 'u8[8192]{0}', space=vmem, size = 0x2000, scoped, tag = 'input window, operand 0, single buffered']
    #allocation3 [shape = 's32[1]{0}', space=sflag, size = 0x4, scoped, tag = 'scoped memory for tpu_custom_call.1']
    #allocation4 [shape = 's32[1]{0}', space=sflag, size = 0x4, scoped, tag = 'scoped memory for tpu_custom_call.1']
    #allocation5 [shape = 'u8[8192]{0}', space=vmem, size = 0x2000, scoped, tag = 'output window, operand 0, single buffered']
    %6 = vsyncpa [#allocation3], 0
    %7 = vsyncpa [#allocation4], 0
    // Predicated region
    $region2: #{tpu_custom_call.1} parent=1 // pred_check
      _
    $region3: #{tpu_custom_call.1} parent=1 // pred_check_branch
      %9 = sbr.rel (0) target = $region5
    $region4: #{tpu_custom_call.1} parent=1 // pred_region
      %11 = vsyncadd [#allocation3], 0
      %s13 = sshll.u32 %s0, 4
      %s14 = int_to_ptr.hbm [resolvable:$true] %s13
      %s15 = sshll.u32 [#allocation2], 4
      %s16 = int_to_ptr.vmem [resolvable:$true] %s15
      %18 = dma.hbm_to_vmem [thread:$0]  %s14, 256, %s16, [#allocation3]
    $region5: #{tpu_custom_call.1} parent=1 // pred_fallthru
      _
    // Predicated region
    $region6: #{tpu_custom_call.1} parent=1 // pred_check
      _
    $region7: #{tpu_custom_call.1} parent=1 // pred_check_branch
      %20 = sbr.rel (0) target = $region9
    $region8: #{tpu_custom_call.1} parent=1 // pred_region
      %22 = dma.done [#allocation3], 256
    $region9: #{tpu_custom_call.1} parent=1 // pred_fallthru
      _
    %v23 = vld [vmem:[#allocation2] sm:$0xff]
    %v24 = vld [vmem:[#allocation2 + $0x8] sm:$0xff]
    %25 = vst [vmem:[#allocation5] sm:$0xff] %v23
    %26 = vst [vmem:[#allocation5 + $0x8] sm:$0xff] %v24
    // Predicated region
    $region10: #{tpu_custom_call.1} parent=1 // pred_check
      _
    $region11: #{tpu_custom_call.1} parent=1 // pred_check_branch
      %28 = sbr.rel (0) target = $region13
    $region12: #{tpu_custom_call.1} parent=1 // pred_region
      %30 = vsyncadd [#allocation4], 0
      %s32 = sshll.u32 [#allocation5], 4
      %s33 = int_to_ptr.vmem [resolvable:$true] %s32
      %s34 = sshll.u32 %s1, 4
      %s35 = int_to_ptr.hbm [resolvable:$true] %s34
      %37 = dma.vmem_to_hbm [thread:$0]  %s33, 256, %s35, [#allocation4]
    $region13: #{tpu_custom_call.1} parent=1 // pred_fallthru
      _
    // Predicated region
    $region14: #{tpu_custom_call.1} parent=1 // pred_check
      _
    $region15: #{tpu_custom_call.1} parent=1 // pred_check_branch
      %39 = sbr.rel (0) target = $region17
    $region16: #{tpu_custom_call.1} parent=1 // pred_region
      %41 = dma.done [#allocation4], 256
    $region17: #{tpu_custom_call.1} parent=1 // pred_fallthru
      _
    %42 = vsyncpa [#allocation3], 1
    %43 = vsyncpa [#allocation4], 1

</llo_original>
